<compile_context>
chip_gen: v5e
topology: v5e:2x2
jax: 0.10.0
libtpu: 0.0.40
codegen_flags: <defaults>
</compile_context>

<pallas_src>
import functools

import numpy as np
import jax
import jax.numpy as jnp
from jax import lax
from jax.experimental import pallas as pl
from jax.experimental.pallas import tpu as pltpu


LANE_BATCH = 128  # sigmas per grid step == TPU lane width


def _sosessm_kernel(log_sigma_ref, out_ref, *, lag: int, eps: float):
    """One grid step processes TB sigmas (batch in the 128-lane axis).

    log_sigma_ref : (1, 1, TB) f32 VMEM block
    out_ref       : (1, lag+1, TB) f32 VMEM block
        rows 0..lag-1 -> x = M11^{-1} m12   (per sigma, natural order)
        row  lag      -> C = (m22 - m21 M11^{-1} m12) / 2
    """
    L = lag
    n = L + 1
    TB = log_sigma_ref.shape[-1]

    # sigma for all TB lanes with one lane-dense EUP exp.
    neg_half_sigma = -0.5 * jnp.exp(log_sigma_ref[0])            # (1, TB)

    # Row-index iotas, hoisted and reused everywhere below.
    i_int = lax.broadcasted_iota(jnp.int32, (n, 1), 0)           # (n, 1)
    i_f32 = i_int.astype(jnp.float32)
    ri_full = lax.broadcasted_iota(jnp.int32, (n, TB), 0)        # (n, TB)

    # Gram-matrix columns M[:, j] = exp(-0.5*sigma*(i-j)^2) + eps*delta_{ij},
    # one lane-dense (n, TB) slab per column (batch in lanes).
    cols = []
    for j in range(n):
        tau = i_f32 - jnp.float32(j)                             # (n, 1)
        col = jnp.exp(neg_half_sigma * (tau * tau))              # (n, TB)
        diag_j = jnp.where(i_int == j, jnp.float32(eps), jnp.float32(0.0))  # (n, 1)
        cols.append(col + diag_j)

    # Gauss-Jordan over the first L pivots (M11 is SPD -> no pivoting needed).
    # Statically unrolled (L, n are tiny); only columns j >= k+1 are touched,
    # since columns < k+1 are already reduced / never read again.
    # Afterwards cols[L] holds [ M11^{-1} m12 ; m22 - m21 M11^{-1} m12 ].
    for k in range(L):
        colk = cols[k]
        inv_pivot = 1.0 / colk[k:k + 1, :]                       # (1, TB), exact reciprocal
        rowk_mask = ri_full == k                                 # (n, TB)
        for j in range(k + 1, n):
            rkj = cols[j][k:k + 1, :] * inv_pivot                # (1, TB): normalized pivot-row entry
            cols[j] = jnp.where(rowk_mask, rkj, cols[j] - colk * rkj)

    # Scale the Schur-complement row by 1/2 (C = R22^T R22 / 2) and store the
    # lane-dense (n, TB) result slab in a single unmasked store.
    scale = jnp.where(i_int == L, jnp.float32(0.5), jnp.float32(1.0))        # (n, 1)
    out_ref[0] = cols[L] * scale


def sosessm_forward_batched(log_sigmas, *, lag: int, eps: float = 1e-4):
    """Batched SOSESSM.forward(): log_sigmas (B,) -> (A, Q), each (B, lag, lag) f32."""
    log_sigmas = jnp.asarray(log_sigmas, dtype=jnp.float32).reshape(-1)
    B = log_sigmas.shape[0]
    TB = LANE_BATCH
    G = (B + TB - 1) // TB
    Bp = G * TB
    # Pad unused lanes with log_sigma = 0 (sigma = 1: perfectly well conditioned;
    # each lane is independent, padded results are sliced away below).
    ls = jnp.pad(log_sigmas, (0, Bp - B)).reshape(G, 1, TB)

    kernel = functools.partial(_sosessm_kernel, lag=lag, eps=eps)
    raw = pl.pallas_call(
        kernel,
        out_shape=jax.ShapeDtypeStruct((G, lag + 1, TB), jnp.float32),
        grid=(G,),
        in_specs=[pl.BlockSpec((1, 1, TB), lambda g: (g, 0, 0))],
        out_specs=pl.BlockSpec((1, lag + 1, TB), lambda g: (g, 0, 0)),
        # Blocks are fully independent; on v7x a CORE_PARALLEL / core_map split of
        # the leading axis would engage the second TensorCore as well.
        compiler_params=pltpu.CompilerParams(dimension_semantics=("parallel",)),
    )(ls)

    # (G, lag+1, TB) -> (B, lag+1): move the batch back to the leading axis.
    vals = jnp.transpose(raw, (0, 2, 1)).reshape(Bp, lag + 1)[:B]
    x = vals[:, :lag]                      # M11^{-1} m12  (== R11^{-1} R12)
    c = vals[:, lag]                       # C = R22^T R22 / 2

    # Structural assembly of A (companion matrix) and Q (= C*I): trivial XLA ops.
    row0 = x[:, ::-1]                                            # reversed -> A row 0
    shift = jnp.concatenate(
        [jnp.eye(lag - 1, dtype=jnp.float32),
         jnp.zeros((lag - 1, 1), dtype=jnp.float32)], axis=1)    # (lag-1, lag): [I | 0]
    A = jnp.concatenate(
        [row0[:, None, :], jnp.broadcast_to(shift, (B, lag - 1, lag))], axis=1)
    Q = c[:, None, None] * jnp.eye(lag, dtype=jnp.float32)
    return A, Q


def sosessm_forward(log_sigma, *, lag: int, eps: float = 1e-4):
    """Single-parameter SOSESSM.forward() (exactly the torch module): (lag, lag) A, Q."""
    ls = jnp.reshape(jnp.asarray(log_sigma, dtype=jnp.float32), (1,))
    A, Q = sosessm_forward_batched(ls, lag=lag, eps=eps)
    return A[0], Q[0]


def _reference_numpy(log_sigma: float, lag: int, eps: float):
    """float64 numpy reference following the torch (Cholesky-based) computation exactly."""
    sigma = np.exp(np.float64(log_sigma))
    n = lag + 1
    t = np.arange(n, dtype=np.float64)
    tau = t[:, None] - t[None, :]
    big = np.exp(-0.5 * sigma * tau ** 2) + eps * np.eye(n)
    R = np.linalg.cholesky(big).T                       # upper triangular
    n_p = lag
    R11, R12, R22 = R[:n_p, :n_p], R[:n_p, n_p:], R[n_p:, n_p:]
    inv_R11 = np.linalg.solve(R11, np.eye(n_p))
    B = (inv_R11 @ R12).T                               # (1, lag)
    C = R22.T @ R22 / 2                                 # (1, 1)
    A_flat = B.reshape(1, lag, 1)[:, ::-1, :].reshape(1, lag)
    IO = np.hstack([np.eye(lag - 1), np.zeros((lag - 1, 1))])
    A_all = np.concatenate([A_flat, IO], axis=0)
    Q_all = np.eye(lag) * C[0, 0]
    return A_all, Q_all


if __name__ == "__main__":
    lag = 8          # small shapes: A, Q are (8, 8)
    num_dim = 1      # SOSESSM requires num_dim == 1
    eps = 1e-4
    B = 200          # 2 lane-batched grid blocks (128 + 72 sigmas, exercises padding)

    # Deterministic inputs: element 0 is the module's default parameter log(0.05);
    # the rest are deterministic perturbations from PRNGKey(0) (kept >= log(0.05)
    # so the Gram matrix stays at least as well-conditioned as the baseline).
    key = jax.random.PRNGKey(0)
    base = jnp.log(jnp.float32(0.05))
    perturb = 0.3 * jnp.abs(jax.random.normal(key, (B - 1,), dtype=jnp.float32))
    log_sigmas = jnp.concatenate([jnp.array([base], dtype=jnp.float32), base + perturb])

    A_b, Q_b = sosessm_forward_batched(log_sigmas, lag=lag, eps=eps)
    jax.block_until_ready((A_b, Q_b))

    assert A_b.shape == (B, lag, lag) and Q_b.shape == (B, lag, lag)
    assert A_b.dtype == jnp.float32 and Q_b.dtype == jnp.float32

    # Check samples from both grid blocks against the float64 Cholesky reference.
    # Loose tolerance: the kernel eliminates a ~1e4-conditioned Gram matrix in f32.
    for i in (0, 1, 63, 127, 128, B - 1):
        A_ref, Q_ref = _reference_numpy(float(log_sigmas[i]), lag, eps)
        assert np.allclose(np.asarray(A_b[i]), A_ref, rtol=5e-2, atol=5e-2), f"A mismatch @ {i}"
        assert np.allclose(np.asarray(Q_b[i]), Q_ref, rtol=5e-2, atol=5e-2), f"Q mismatch @ {i}"

    # Single-parameter path (exactly the torch module's forward()).
    A1, Q1 = sosessm_forward(base, lag=lag, eps=eps)
    jax.block_until_ready((A1, Q1))
    assert np.allclose(np.asarray(A1), np.asarray(A_b[0]), rtol=1e-6, atol=1e-6)
    assert np.allclose(np.asarray(Q1), np.asarray(Q_b[0]), rtol=1e-6, atol=1e-6)

    print("KERNEL_OK")
</pallas_src>

<mosaic_0001>
module attributes {stable_mosaic.version = 11 : i64} {
  func.func @_sosessm_kernel(%arg0: i32, %arg1: memref<1x1x128xf32, #tpu.memory_space<vmem>>, %arg2: memref<1x9x128xf32, #tpu.memory_space<vmem>>) attributes {dimension_semantics = [#tpu.dimension_semantics<parallel>], iteration_bounds = array<i64: 2>, scalar_prefetch = 0 : i64, scratch_operands = 0 : i64, tpu.core_type = #tpu.core_type<tc>, window_params = [{transform_indices = @transform_0, window_bounds = array<i64: 1, 1, 128>}, {transform_indices = @transform_1, window_bounds = array<i64: 1, 9, 128>}]} {
    %c0 = arith.constant 0 : index
    %c0_0 = arith.constant 0 : index
    %c0_1 = arith.constant 0 : index
    %0 = vector.load %arg1[%c0, %c0_0, %c0_1] : memref<1x1x128xf32, #tpu.memory_space<vmem>>, vector<1x1x128xf32>
    %1 = vector.shape_cast %0 : vector<1x1x128xf32> to vector<1x128xf32>
    %2 = math.exp %1 : vector<1x128xf32>
    %cst = arith.constant -5.000000e-01 : f32
    %3 = vector.broadcast %cst : f32 to vector<1x128xf32>
    %4 = arith.mulf %3, %2 : vector<1x128xf32>
    %5 = tpu.iota {dimensions = array<i32: 0>} : vector<9x1xi32>
    %6 = arith.sitofp %5 : vector<9x1xi32> to vector<9x1xf32>
    %7 = tpu.iota {dimensions = array<i32: 0>} : vector<9x128xi32>
    %cst_2 = arith.constant 0.000000e+00 : f32
    %8 = vector.broadcast %cst_2 : f32 to vector<9x1xf32>
    %9 = arith.subf %6, %8 : vector<9x1xf32>
    %10 = arith.mulf %9, %9 : vector<9x1xf32>
    %11 = vector.broadcast %4 : vector<1x128xf32> to vector<9x128xf32>
    %12 = vector.broadcast %10 : vector<9x1xf32> to vector<9x128xf32>
    %13 = arith.mulf %11, %12 : vector<9x128xf32>
    %14 = math.exp %13 : vector<9x128xf32>
    %c0_i32 = arith.constant 0 : i32
    %15 = vector.broadcast %c0_i32 : i32 to vector<9x1xi32>
    %16 = arith.cmpi eq, %5, %15 : vector<9x1xi32>
    %cst_3 = arith.constant 9.99999974E-5 : f32
    %cst_4 = arith.constant 0.000000e+00 : f32
    %17 = vector.broadcast %cst_3 : f32 to vector<9x1xf32>
    %18 = vector.broadcast %cst_4 : f32 to vector<9x1xf32>
    %19 = arith.select %16, %17, %18 : vector<9x1xi1>, vector<9x1xf32>
    %20 = vector.broadcast %19 : vector<9x1xf32> to vector<9x128xf32>
    %21 = arith.addf %14, %20 : vector<9x128xf32>
    %cst_5 = arith.constant 1.000000e+00 : f32
    %22 = vector.broadcast %cst_5 : f32 to vector<9x1xf32>
    %23 = arith.subf %6, %22 : vector<9x1xf32>
    %24 = arith.mulf %23, %23 : vector<9x1xf32>
    %25 = vector.broadcast %4 : vector<1x128xf32> to vector<9x128xf32>
    %26 = vector.broadcast %24 : vector<9x1xf32> to vector<9x128xf32>
    %27 = arith.mulf %25, %26 : vector<9x128xf32>
    %28 = math.exp %27 : vector<9x128xf32>
    %c1_i32 = arith.constant 1 : i32
    %29 = vector.broadcast %c1_i32 : i32 to vector<9x1xi32>
    %30 = arith.cmpi eq, %5, %29 : vector<9x1xi32>
    %cst_6 = arith.constant 9.99999974E-5 : f32
    %cst_7 = arith.constant 0.000000e+00 : f32
    %31 = vector.broadcast %cst_6 : f32 to vector<9x1xf32>
    %32 = vector.broadcast %cst_7 : f32 to vector<9x1xf32>
    %33 = arith.select %30, %31, %32 : vector<9x1xi1>, vector<9x1xf32>
    %34 = vector.broadcast %33 : vector<9x1xf32> to vector<9x128xf32>
    %35 = arith.addf %28, %34 : vector<9x128xf32>
    %cst_8 = arith.constant 2.000000e+00 : f32
    %36 = vector.broadcast %cst_8 : f32 to vector<9x1xf32>
    %37 = arith.subf %6, %36 : vector<9x1xf32>
    %38 = arith.mulf %37, %37 : vector<9x1xf32>
    %39 = vector.broadcast %4 : vector<1x128xf32> to vector<9x128xf32>
    %40 = vector.broadcast %38 : vector<9x1xf32> to vector<9x128xf32>
    %41 = arith.mulf %39, %40 : vector<9x128xf32>
    %42 = math.exp %41 : vector<9x128xf32>
    %c2_i32 = arith.constant 2 : i32
    %43 = vector.broadcast %c2_i32 : i32 to vector<9x1xi32>
    %44 = arith.cmpi eq, %5, %43 : vector<9x1xi32>
    %cst_9 = arith.constant 9.99999974E-5 : f32
    %cst_10 = arith.constant 0.000000e+00 : f32
    %45 = vector.broadcast %cst_9 : f32 to vector<9x1xf32>
    %46 = vector.broadcast %cst_10 : f32 to vector<9x1xf32>
    %47 = arith.select %44, %45, %46 : vector<9x1xi1>, vector<9x1xf32>
    %48 = vector.broadcast %47 : vector<9x1xf32> to vector<9x128xf32>
    %49 = arith.addf %42, %48 : vector<9x128xf32>
    %cst_11 = arith.constant 3.000000e+00 : f32
    %50 = vector.broadcast %cst_11 : f32 to vector<9x1xf32>
    %51 = arith.subf %6, %50 : vector<9x1xf32>
    %52 = arith.mulf %51, %51 : vector<9x1xf32>
    %53 = vector.broadcast %4 : vector<1x128xf32> to vector<9x128xf32>
    %54 = vector.broadcast %52 : vector<9x1xf32> to vector<9x128xf32>
    %55 = arith.mulf %53, %54 : vector<9x128xf32>
    %56 = math.exp %55 : vector<9x128xf32>
    %c3_i32 = arith.constant 3 : i32
    %57 = vector.broadcast %c3_i32 : i32 to vector<9x1xi32>
    %58 = arith.cmpi eq, %5, %57 : vector<9x1xi32>
    %cst_12 = arith.constant 9.99999974E-5 : f32
    %cst_13 = arith.constant 0.000000e+00 : f32
    %59 = vector.broadcast %cst_12 : f32 to vector<9x1xf32>
    %60 = vector.broadcast %cst_13 : f32 to vector<9x1xf32>
    %61 = arith.select %58, %59, %60 : vector<9x1xi1>, vector<9x1xf32>
    %62 = vector.broadcast %61 : vector<9x1xf32> to vector<9x128xf32>
    %63 = arith.addf %56, %62 : vector<9x128xf32>
    %cst_14 = arith.constant 4.000000e+00 : f32
    %64 = vector.broadcast %cst_14 : f32 to vector<9x1xf32>
    %65 = arith.subf %6, %64 : vector<9x1xf32>
    %66 = arith.mulf %65, %65 : vector<9x1xf32>
    %67 = vector.broadcast %4 : vector<1x128xf32> to vector<9x128xf32>
    %68 = vector.broadcast %66 : vector<9x1xf32> to vector<9x128xf32>
    %69 = arith.mulf %67, %68 : vector<9x128xf32>
    %70 = math.exp %69 : vector<9x128xf32>
    %c4_i32 = arith.constant 4 : i32
    %71 = vector.broadcast %c4_i32 : i32 to vector<9x1xi32>
    %72 = arith.cmpi eq, %5, %71 : vector<9x1xi32>
    %cst_15 = arith.constant 9.99999974E-5 : f32
    %cst_16 = arith.constant 0.000000e+00 : f32
    %73 = vector.broadcast %cst_15 : f32 to vector<9x1xf32>
    %74 = vector.broadcast %cst_16 : f32 to vector<9x1xf32>
    %75 = arith.select %72, %73, %74 : vector<9x1xi1>, vector<9x1xf32>
    %76 = vector.broadcast %75 : vector<9x1xf32> to vector<9x128xf32>
    %77 = arith.addf %70, %76 : vector<9x128xf32>
    %cst_17 = arith.constant 5.000000e+00 : f32
    %78 = vector.broadcast %cst_17 : f32 to vector<9x1xf32>
    %79 = arith.subf %6, %78 : vector<9x1xf32>
    %80 = arith.mulf %79, %79 : vector<9x1xf32>
    %81 = vector.broadcast %4 : vector<1x128xf32> to vector<9x128xf32>
    %82 = vector.broadcast %80 : vector<9x1xf32> to vector<9x128xf32>
    %83 = arith.mulf %81, %82 : vector<9x128xf32>
    %84 = math.exp %83 : vector<9x128xf32>
    %c5_i32 = arith.constant 5 : i32
    %85 = vector.broadcast %c5_i32 : i32 to vector<9x1xi32>
    %86 = arith.cmpi eq, %5, %85 : vector<9x1xi32>
    %cst_18 = arith.constant 9.99999974E-5 : f32
    %cst_19 = arith.constant 0.000000e+00 : f32
    %87 = vector.broadcast %cst_18 : f32 to vector<9x1xf32>
    %88 = vector.broadcast %cst_19 : f32 to vector<9x1xf32>
    %89 = arith.select %86, %87, %88 : vector<9x1xi1>, vector<9x1xf32>
    %90 = vector.broadcast %89 : vector<9x1xf32> to vector<9x128xf32>
    %91 = arith.addf %84, %90 : vector<9x128xf32>
    %cst_20 = arith.constant 6.000000e+00 : f32
    %92 = vector.broadcast %cst_20 : f32 to vector<9x1xf32>
    %93 = arith.subf %6, %92 : vector<9x1xf32>
    %94 = arith.mulf %93, %93 : vector<9x1xf32>
    %95 = vector.broadcast %4 : vector<1x128xf32> to vector<9x128xf32>
    %96 = vector.broadcast %94 : vector<9x1xf32> to vector<9x128xf32>
    %97 = arith.mulf %95, %96 : vector<9x128xf32>
    %98 = math.exp %97 : vector<9x128xf32>
    %c6_i32 = arith.constant 6 : i32
    %99 = vector.broadcast %c6_i32 : i32 to vector<9x1xi32>
    %100 = arith.cmpi eq, %5, %99 : vector<9x1xi32>
    %cst_21 = arith.constant 9.99999974E-5 : f32
    %cst_22 = arith.constant 0.000000e+00 : f32
    %101 = vector.broadcast %cst_21 : f32 to vector<9x1xf32>
    %102 = vector.broadcast %cst_22 : f32 to vector<9x1xf32>
    %103 = arith.select %100, %101, %102 : vector<9x1xi1>, vector<9x1xf32>
    %104 = vector.broadcast %103 : vector<9x1xf32> to vector<9x128xf32>
    %105 = arith.addf %98, %104 : vector<9x128xf32>
    %cst_23 = arith.constant 7.000000e+00 : f32
    %106 = vector.broadcast %cst_23 : f32 to vector<9x1xf32>
    %107 = arith.subf %6, %106 : vector<9x1xf32>
    %108 = arith.mulf %107, %107 : vector<9x1xf32>
    %109 = vector.broadcast %4 : vector<1x128xf32> to vector<9x128xf32>
    %110 = vector.broadcast %108 : vector<9x1xf32> to vector<9x128xf32>
    %111 = arith.mulf %109, %110 : vector<9x128xf32>
    %112 = math.exp %111 : vector<9x128xf32>
    %c7_i32 = arith.constant 7 : i32
    %113 = vector.broadcast %c7_i32 : i32 to vector<9x1xi32>
    %114 = arith.cmpi eq, %5, %113 : vector<9x1xi32>
    %cst_24 = arith.constant 9.99999974E-5 : f32
    %cst_25 = arith.constant 0.000000e+00 : f32
    %115 = vector.broadcast %cst_24 : f32 to vector<9x1xf32>
    %116 = vector.broadcast %cst_25 : f32 to vector<9x1xf32>
    %117 = arith.select %114, %115, %116 : vector<9x1xi1>, vector<9x1xf32>
    %118 = vector.broadcast %117 : vector<9x1xf32> to vector<9x128xf32>
    %119 = arith.addf %112, %118 : vector<9x128xf32>
    %cst_26 = arith.constant 8.000000e+00 : f32
    %120 = vector.broadcast %cst_26 : f32 to vector<9x1xf32>
    %121 = arith.subf %6, %120 : vector<9x1xf32>
    %122 = arith.mulf %121, %121 : vector<9x1xf32>
    %123 = vector.broadcast %4 : vector<1x128xf32> to vector<9x128xf32>
    %124 = vector.broadcast %122 : vector<9x1xf32> to vector<9x128xf32>
    %125 = arith.mulf %123, %124 : vector<9x128xf32>
    %126 = math.exp %125 : vector<9x128xf32>
    %c8_i32 = arith.constant 8 : i32
    %127 = vector.broadcast %c8_i32 : i32 to vector<9x1xi32>
    %128 = arith.cmpi eq, %5, %127 : vector<9x1xi32>
    %cst_27 = arith.constant 9.99999974E-5 : f32
    %cst_28 = arith.constant 0.000000e+00 : f32
    %129 = vector.broadcast %cst_27 : f32 to vector<9x1xf32>
    %130 = vector.broadcast %cst_28 : f32 to vector<9x1xf32>
    %131 = arith.select %128, %129, %130 : vector<9x1xi1>, vector<9x1xf32>
    %132 = vector.broadcast %131 : vector<9x1xf32> to vector<9x128xf32>
    %133 = arith.addf %126, %132 : vector<9x128xf32>
    %134 = vector.extract_strided_slice %21 {offsets = [0, 0], sizes = [1, 128], strides = [1, 1]} : vector<9x128xf32> to vector<1x128xf32>
    %cst_29 = arith.constant 1.000000e+00 : f32
    %135 = vector.broadcast %cst_29 : f32 to vector<1x128xf32>
    %136 = arith.divf %135, %134 : vector<1x128xf32>
    %c0_i32_30 = arith.constant 0 : i32
    %137 = vector.broadcast %c0_i32_30 : i32 to vector<9x128xi32>
    %138 = arith.cmpi eq, %7, %137 : vector<9x128xi32>
    %139 = vector.extract_strided_slice %35 {offsets = [0, 0], sizes = [1, 128], strides = [1, 1]} : vector<9x128xf32> to vector<1x128xf32>
    %140 = arith.mulf %139, %136 : vector<1x128xf32>
    %141 = vector.broadcast %140 : vector<1x128xf32> to vector<9x128xf32>
    %142 = arith.mulf %21, %141 : vector<9x128xf32>
    %143 = arith.subf %35, %142 : vector<9x128xf32>
    %144 = vector.shape_cast %140 : vector<1x128xf32> to vector<1x128xf32>
    %145 = vector.broadcast %144 : vector<1x128xf32> to vector<9x128xf32>
    %146 = arith.select %138, %145, %143 : vector<9x128xi1>, vector<9x128xf32>
    %147 = vector.extract_strided_slice %49 {offsets = [0, 0], sizes = [1, 128], strides = [1, 1]} : vector<9x128xf32> to vector<1x128xf32>
    %148 = arith.mulf %147, %136 : vector<1x128xf32>
    %149 = vector.broadcast %148 : vector<1x128xf32> to vector<9x128xf32>
    %150 = arith.mulf %21, %149 : vector<9x128xf32>
    %151 = arith.subf %49, %150 : vector<9x128xf32>
    %152 = vector.shape_cast %148 : vector<1x128xf32> to vector<1x128xf32>
    %153 = vector.broadcast %152 : vector<1x128xf32> to vector<9x128xf32>
    %154 = arith.select %138, %153, %151 : vector<9x128xi1>, vector<9x128xf32>
    %155 = vector.extract_strided_slice %63 {offsets = [0, 0], sizes = [1, 128], strides = [1, 1]} : vector<9x128xf32> to vector<1x128xf32>
    %156 = arith.mulf %155, %136 : vector<1x128xf32>
    %157 = vector.broadcast %156 : vector<1x128xf32> to vector<9x128xf32>
    %158 = arith.mulf %21, %157 : vector<9x128xf32>
    %159 = arith.subf %63, %158 : vector<9x128xf32>
    %160 = vector.shape_cast %156 : vector<1x128xf32> to vector<1x128xf32>
    %161 = vector.broadcast %160 : vector<1x128xf32> to vector<9x128xf32>
    %162 = arith.select %138, %161, %159 : vector<9x128xi1>, vector<9x128xf32>
    %163 = vector.extract_strided_slice %77 {offsets = [0, 0], sizes = [1, 128], strides = [1, 1]} : vector<9x128xf32> to vector<1x128xf32>
    %164 = arith.mulf %163, %136 : vector<1x128xf32>
    %165 = vector.broadcast %164 : vector<1x128xf32> to vector<9x128xf32>
    %166 = arith.mulf %21, %165 : vector<9x128xf32>
    %167 = arith.subf %77, %166 : vector<9x128xf32>
    %168 = vector.shape_cast %164 : vector<1x128xf32> to vector<1x128xf32>
    %169 = vector.broadcast %168 : vector<1x128xf32> to vector<9x128xf32>
    %170 = arith.select %138, %169, %167 : vector<9x128xi1>, vector<9x128xf32>
    %171 = vector.extract_strided_slice %91 {offsets = [0, 0], sizes = [1, 128], strides = [1, 1]} : vector<9x128xf32> to vector<1x128xf32>
    %172 = arith.mulf %171, %136 : vector<1x128xf32>
    %173 = vector.broadcast %172 : vector<1x128xf32> to vector<9x128xf32>
    %174 = arith.mulf %21, %173 : vector<9x128xf32>
    %175 = arith.subf %91, %174 : vector<9x128xf32>
    %176 = vector.shape_cast %172 : vector<1x128xf32> to vector<1x128xf32>
    %177 = vector.broadcast %176 : vector<1x128xf32> to vector<9x128xf32>
    %178 = arith.select %138, %177, %175 : vector<9x128xi1>, vector<9x128xf32>
    %179 = vector.extract_strided_slice %105 {offsets = [0, 0], sizes = [1, 128], strides = [1, 1]} : vector<9x128xf32> to vector<1x128xf32>
    %180 = arith.mulf %179, %136 : vector<1x128xf32>
    %181 = vector.broadcast %180 : vector<1x128xf32> to vector<9x128xf32>
    %182 = arith.mulf %21, %181 : vector<9x128xf32>
    %183 = arith.subf %105, %182 : vector<9x128xf32>
    %184 = vector.shape_cast %180 : vector<1x128xf32> to vector<1x128xf32>
    %185 = vector.broadcast %184 : vector<1x128xf32> to vector<9x128xf32>
    %186 = arith.select %138, %185, %183 : vector<9x128xi1>, vector<9x128xf32>
    %187 = vector.extract_strided_slice %119 {offsets = [0, 0], sizes = [1, 128], strides = [1, 1]} : vector<9x128xf32> to vector<1x128xf32>
    %188 = arith.mulf %187, %136 : vector<1x128xf32>
    %189 = vector.broadcast %188 : vector<1x128xf32> to vector<9x128xf32>
    %190 = arith.mulf %21, %189 : vector<9x128xf32>
    %191 = arith.subf %119, %190 : vector<9x128xf32>
    %192 = vector.shape_cast %188 : vector<1x128xf32> to vector<1x128xf32>
    %193 = vector.broadcast %192 : vector<1x128xf32> to vector<9x128xf32>
    %194 = arith.select %138, %193, %191 : vector<9x128xi1>, vector<9x128xf32>
    %195 = vector.extract_strided_slice %133 {offsets = [0, 0], sizes = [1, 128], strides = [1, 1]} : vector<9x128xf32> to vector<1x128xf32>
    %196 = arith.mulf %195, %136 : vector<1x128xf32>
    %197 = vector.broadcast %196 : vector<1x128xf32> to vector<9x128xf32>
    %198 = arith.mulf %21, %197 : vector<9x128xf32>
    %199 = arith.subf %133, %198 : vector<9x128xf32>
    %200 = vector.shape_cast %196 : vector<1x128xf32> to vector<1x128xf32>
    %201 = vector.broadcast %200 : vector<1x128xf32> to vector<9x128xf32>
    %202 = arith.select %138, %201, %199 : vector<9x128xi1>, vector<9x128xf32>
    %203 = vector.extract_strided_slice %146 {offsets = [1, 0], sizes = [1, 128], strides = [1, 1]} : vector<9x128xf32> to vector<1x128xf32>
    %cst_31 = arith.constant 1.000000e+00 : f32
    %204 = vector.broadcast %cst_31 : f32 to vector<1x128xf32>
    %205 = arith.divf %204, %203 : vector<1x128xf32>
    %c1_i32_32 = arith.constant 1 : i32
    %206 = vector.broadcast %c1_i32_32 : i32 to vector<9x128xi32>
    %207 = arith.cmpi eq, %7, %206 : vector<9x128xi32>
    %208 = vector.extract_strided_slice %154 {offsets = [1, 0], sizes = [1, 128], strides = [1, 1]} : vector<9x128xf32> to vector<1x128xf32>
    %209 = arith.mulf %208, %205 : vector<1x128xf32>
    %210 = vector.broadcast %209 : vector<1x128xf32> to vector<9x128xf32>
    %211 = arith.mulf %146, %210 : vector<9x128xf32>
    %212 = arith.subf %154, %211 : vector<9x128xf32>
    %213 = vector.shape_cast %209 : vector<1x128xf32> to vector<1x128xf32>
    %214 = vector.broadcast %213 : vector<1x128xf32> to vector<9x128xf32>
    %215 = arith.select %207, %214, %212 : vector<9x128xi1>, vector<9x128xf32>
    %216 = vector.extract_strided_slice %162 {offsets = [1, 0], sizes = [1, 128], strides = [1, 1]} : vector<9x128xf32> to vector<1x128xf32>
    %217 = arith.mulf %216, %205 : vector<1x128xf32>
    %218 = vector.broadcast %217 : vector<1x128xf32> to vector<9x128xf32>
    %219 = arith.mulf %146, %218 : vector<9x128xf32>
    %220 = arith.subf %162, %219 : vector<9x128xf32>
    %221 = vector.shape_cast %217 : vector<1x128xf32> to vector<1x128xf32>
    %222 = vector.broadcast %221 : vector<1x128xf32> to vector<9x128xf32>
    %223 = arith.select %207, %222, %220 : vector<9x128xi1>, vector<9x128xf32>
    %224 = vector.extract_strided_slice %170 {offsets = [1, 0], sizes = [1, 128], strides = [1, 1]} : vector<9x128xf32> to vector<1x128xf32>
    %225 = arith.mulf %224, %205 : vector<1x128xf32>
    %226 = vector.broadcast %225 : vector<1x128xf32> to vector<9x128xf32>
    %227 = arith.mulf %146, %226 : vector<9x128xf32>
    %228 = arith.subf %170, %227 : vector<9x128xf32>
    %229 = vector.shape_cast %225 : vector<1x128xf32> to vector<1x128xf32>
    %230 = vector.broadcast %229 : vector<1x128xf32> to vector<9x128xf32>
    %231 = arith.select %207, %230, %228 : vector<9x128xi1>, vector<9x128xf32>
    %232 = vector.extract_strided_slice %178 {offsets = [1, 0], sizes = [1, 128], strides = [1, 1]} : vector<9x128xf32> to vector<1x128xf32>
    %233 = arith.mulf %232, %205 : vector<1x128xf32>
    %234 = vector.broadcast %233 : vector<1x128xf32> to vector<9x128xf32>
    %235 = arith.mulf %146, %234 : vector<9x128xf32>
    %236 = arith.subf %178, %235 : vector<9x128xf32>
    %237 = vector.shape_cast %233 : vector<1x128xf32> to vector<1x128xf32>
    %238 = vector.broadcast %237 : vector<1x128xf32> to vector<9x128xf32>
    %239 = arith.select %207, %238, %236 : vector<9x128xi1>, vector<9x128xf32>
    %240 = vector.extract_strided_slice %186 {offsets = [1, 0], sizes = [1, 128], strides = [1, 1]} : vector<9x128xf32> to vector<1x128xf32>
    %241 = arith.mulf %240, %205 : vector<1x128xf32>
    %242 = vector.broadcast %241 : vector<1x128xf32> to vector<9x128xf32>
    %243 = arith.mulf %146, %242 : vector<9x128xf32>
    %244 = arith.subf %186, %243 : vector<9x128xf32>
    %245 = vector.shape_cast %241 : vector<1x128xf32> to vector<1x128xf32>
    %246 = vector.broadcast %245 : vector<1x128xf32> to vector<9x128xf32>
    %247 = arith.select %207, %246, %244 : vector<9x128xi1>, vector<9x128xf32>
    %248 = vector.extract_strided_slice %194 {offsets = [1, 0], sizes = [1, 128], strides = [1, 1]} : vector<9x128xf32> to vector<1x128xf32>
    %249 = arith.mulf %248, %205 : vector<1x128xf32>
    %250 = vector.broadcast %249 : vector<1x128xf32> to vector<9x128xf32>
    %251 = arith.mulf %146, %250 : vector<9x128xf32>
    %252 = arith.subf %194, %251 : vector<9x128xf32>
    %253 = vector.shape_cast %249 : vector<1x128xf32> to vector<1x128xf32>
    %254 = vector.broadcast %253 : vector<1x128xf32> to vector<9x128xf32>
    %255 = arith.select %207, %254, %252 : vector<9x128xi1>, vector<9x128xf32>
    %256 = vector.extract_strided_slice %202 {offsets = [1, 0], sizes = [1, 128], strides = [1, 1]} : vector<9x128xf32> to vector<1x128xf32>
    %257 = arith.mulf %256, %205 : vector<1x128xf32>
    %258 = vector.broadcast %257 : vector<1x128xf32> to vector<9x128xf32>
    %259 = arith.mulf %146, %258 : vector<9x128xf32>
    %260 = arith.subf %202, %259 : vector<9x128xf32>
    %261 = vector.shape_cast %257 : vector<1x128xf32> to vector<1x128xf32>
    %262 = vector.broadcast %261 : vector<1x128xf32> to vector<9x128xf32>
    %263 = arith.select %207, %262, %260 : vector<9x128xi1>, vector<9x128xf32>
    %264 = vector.extract_strided_slice %215 {offsets = [2, 0], sizes = [1, 128], strides = [1, 1]} : vector<9x128xf32> to vector<1x128xf32>
    %cst_33 = arith.constant 1.000000e+00 : f32
    %265 = vector.broadcast %cst_33 : f32 to vector<1x128xf32>
    %266 = arith.divf %265, %264 : vector<1x128xf32>
    %c2_i32_34 = arith.constant 2 : i32
    %267 = vector.broadcast %c2_i32_34 : i32 to vector<9x128xi32>
    %268 = arith.cmpi eq, %7, %267 : vector<9x128xi32>
    %269 = vector.extract_strided_slice %223 {offsets = [2, 0], sizes = [1, 128], strides = [1, 1]} : vector<9x128xf32> to vector<1x128xf32>
    %270 = arith.mulf %269, %266 : vector<1x128xf32>
    %271 = vector.broadcast %270 : vector<1x128xf32> to vector<9x128xf32>
    %272 = arith.mulf %215, %271 : vector<9x128xf32>
    %273 = arith.subf %223, %272 : vector<9x128xf32>
    %274 = vector.shape_cast %270 : vector<1x128xf32> to vector<1x128xf32>
    %275 = vector.broadcast %274 : vector<1x128xf32> to vector<9x128xf32>
    %276 = arith.select %268, %275, %273 : vector<9x128xi1>, vector<9x128xf32>
    %277 = vector.extract_strided_slice %231 {offsets = [2, 0], sizes = [1, 128], strides = [1, 1]} : vector<9x128xf32> to vector<1x128xf32>
    %278 = arith.mulf %277, %266 : vector<1x128xf32>
    %279 = vector.broadcast %278 : vector<1x128xf32> to vector<9x128xf32>
    %280 = arith.mulf %215, %279 : vector<9x128xf32>
    %281 = arith.subf %231, %280 : vector<9x128xf32>
    %282 = vector.shape_cast %278 : vector<1x128xf32> to vector<1x128xf32>
    %283 = vector.broadcast %282 : vector<1x128xf32> to vector<9x128xf32>
    %284 = arith.select %268, %283, %281 : vector<9x128xi1>, vector<9x128xf32>
    %285 = vector.extract_strided_slice %239 {offsets = [2, 0], sizes = [1, 128], strides = [1, 1]} : vector<9x128xf32> to vector<1x128xf32>
    %286 = arith.mulf %285, %266 : vector<1x128xf32>
    %287 = vector.broadcast %286 : vector<1x128xf32> to vector<9x128xf32>
    %288 = arith.mulf %215, %287 : vector<9x128xf32>
    %289 = arith.subf %239, %288 : vector<9x128xf32>
    %290 = vector.shape_cast %286 : vector<1x128xf32> to vector<1x128xf32>
    %291 = vector.broadcast %290 : vector<1x128xf32> to vector<9x128xf32>
    %292 = arith.select %268, %291, %289 : vector<9x128xi1>, vector<9x128xf32>
    %293 = vector.extract_strided_slice %247 {offsets = [2, 0], sizes = [1, 128], strides = [1, 1]} : vector<9x128xf32> to vector<1x128xf32>
    %294 = arith.mulf %293, %266 : vector<1x128xf32>
    %295 = vector.broadcast %294 : vector<1x128xf32> to vector<9x128xf32>
    %296 = arith.mulf %215, %295 : vector<9x128xf32>
    %297 = arith.subf %247, %296 : vector<9x128xf32>
    %298 = vector.shape_cast %294 : vector<1x128xf32> to vector<1x128xf32>
    %299 = vector.broadcast %298 : vector<1x128xf32> to vector<9x128xf32>
    %300 = arith.select %268, %299, %297 : vector<9x128xi1>, vector<9x128xf32>
    %301 = vector.extract_strided_slice %255 {offsets = [2, 0], sizes = [1, 128], strides = [1, 1]} : vector<9x128xf32> to vector<1x128xf32>
    %302 = arith.mulf %301, %266 : vector<1x128xf32>
    %303 = vector.broadcast %302 : vector<1x128xf32> to vector<9x128xf32>
    %304 = arith.mulf %215, %303 : vector<9x128xf32>
    %305 = arith.subf %255, %304 : vector<9x128xf32>
    %306 = vector.shape_cast %302 : vector<1x128xf32> to vector<1x128xf32>
    %307 = vector.broadcast %306 : vector<1x128xf32> to vector<9x128xf32>
    %308 = arith.select %268, %307, %305 : vector<9x128xi1>, vector<9x128xf32>
    %309 = vector.extract_strided_slice %263 {offsets = [2, 0], sizes = [1, 128], strides = [1, 1]} : vector<9x128xf32> to vector<1x128xf32>
    %310 = arith.mulf %309, %266 : vector<1x128xf32>
    %311 = vector.broadcast %310 : vector<1x128xf32> to vector<9x128xf32>
    %312 = arith.mulf %215, %311 : vector<9x128xf32>
    %313 = arith.subf %263, %312 : vector<9x128xf32>
    %314 = vector.shape_cast %310 : vector<1x128xf32> to vector<1x128xf32>
    %315 = vector.broadcast %314 : vector<1x128xf32> to vector<9x128xf32>
    %316 = arith.select %268, %315, %313 : vector<9x128xi1>, vector<9x128xf32>
    %317 = vector.extract_strided_slice %276 {offsets = [3, 0], sizes = [1, 128], strides = [1, 1]} : vector<9x128xf32> to vector<1x128xf32>
    %cst_35 = arith.constant 1.000000e+00 : f32
    %318 = vector.broadcast %cst_35 : f32 to vector<1x128xf32>
    %319 = arith.divf %318, %317 : vector<1x128xf32>
    %c3_i32_36 = arith.constant 3 : i32
    %320 = vector.broadcast %c3_i32_36 : i32 to vector<9x128xi32>
    %321 = arith.cmpi eq, %7, %320 : vector<9x128xi32>
    %322 = vector.extract_strided_slice %284 {offsets = [3, 0], sizes = [1, 128], strides = [1, 1]} : vector<9x128xf32> to vector<1x128xf32>
    %323 = arith.mulf %322, %319 : vector<1x128xf32>
    %324 = vector.broadcast %323 : vector<1x128xf32> to vector<9x128xf32>
    %325 = arith.mulf %276, %324 : vector<9x128xf32>
    %326 = arith.subf %284, %325 : vector<9x128xf32>
    %327 = vector.shape_cast %323 : vector<1x128xf32> to vector<1x128xf32>
    %328 = vector.broadcast %327 : vector<1x128xf32> to vector<9x128xf32>
    %329 = arith.select %321, %328, %326 : vector<9x128xi1>, vector<9x128xf32>
    %330 = vector.extract_strided_slice %292 {offsets = [3, 0], sizes = [1, 128], strides = [1, 1]} : vector<9x128xf32> to vector<1x128xf32>
    %331 = arith.mulf %330, %319 : vector<1x128xf32>
    %332 = vector.broadcast %331 : vector<1x128xf32> to vector<9x128xf32>
    %333 = arith.mulf %276, %332 : vector<9x128xf32>
    %334 = arith.subf %292, %333 : vector<9x128xf32>
    %335 = vector.shape_cast %331 : vector<1x128xf32> to vector<1x128xf32>
    %336 = vector.broadcast %335 : vector<1x128xf32> to vector<9x128xf32>
    %337 = arith.select %321, %336, %334 : vector<9x128xi1>, vector<9x128xf32>
    %338 = vector.extract_strided_slice %300 {offsets = [3, 0], sizes = [1, 128], strides = [1, 1]} : vector<9x128xf32> to vector<1x128xf32>
    %339 = arith.mulf %338, %319 : vector<1x128xf32>
    %340 = vector.broadcast %339 : vector<1x128xf32> to vector<9x128xf32>
    %341 = arith.mulf %276, %340 : vector<9x128xf32>
    %342 = arith.subf %300, %341 : vector<9x128xf32>
    %343 = vector.shape_cast %339 : vector<1x128xf32> to vector<1x128xf32>
    %344 = vector.broadcast %343 : vector<1x128xf32> to vector<9x128xf32>
    %345 = arith.select %321, %344, %342 : vector<9x128xi1>, vector<9x128xf32>
    %346 = vector.extract_strided_slice %308 {offsets = [3, 0], sizes = [1, 128], strides = [1, 1]} : vector<9x128xf32> to vector<1x128xf32>
    %347 = arith.mulf %346, %319 : vector<1x128xf32>
    %348 = vector.broadcast %347 : vector<1x128xf32> to vector<9x128xf32>
    %349 = arith.mulf %276, %348 : vector<9x128xf32>
    %350 = arith.subf %308, %349 : vector<9x128xf32>
    %351 = vector.shape_cast %347 : vector<1x128xf32> to vector<1x128xf32>
    %352 = vector.broadcast %351 : vector<1x128xf32> to vector<9x128xf32>
    %353 = arith.select %321, %352, %350 : vector<9x128xi1>, vector<9x128xf32>
    %354 = vector.extract_strided_slice %316 {offsets = [3, 0], sizes = [1, 128], strides = [1, 1]} : vector<9x128xf32> to vector<1x128xf32>
    %355 = arith.mulf %354, %319 : vector<1x128xf32>
    %356 = vector.broadcast %355 : vector<1x128xf32> to vector<9x128xf32>
    %357 = arith.mulf %276, %356 : vector<9x128xf32>
    %358 = arith.subf %316, %357 : vector<9x128xf32>
    %359 = vector.shape_cast %355 : vector<1x128xf32> to vector<1x128xf32>
    %360 = vector.broadcast %359 : vector<1x128xf32> to vector<9x128xf32>
    %361 = arith.select %321, %360, %358 : vector<9x128xi1>, vector<9x128xf32>
    %362 = vector.extract_strided_slice %329 {offsets = [4, 0], sizes = [1, 128], strides = [1, 1]} : vector<9x128xf32> to vector<1x128xf32>
    %cst_37 = arith.constant 1.000000e+00 : f32
    %363 = vector.broadcast %cst_37 : f32 to vector<1x128xf32>
    %364 = arith.divf %363, %362 : vector<1x128xf32>
    %c4_i32_38 = arith.constant 4 : i32
    %365 = vector.broadcast %c4_i32_38 : i32 to vector<9x128xi32>
    %366 = arith.cmpi eq, %7, %365 : vector<9x128xi32>
    %367 = vector.extract_strided_slice %337 {offsets = [4, 0], sizes = [1, 128], strides = [1, 1]} : vector<9x128xf32> to vector<1x128xf32>
    %368 = arith.mulf %367, %364 : vector<1x128xf32>
    %369 = vector.broadcast %368 : vector<1x128xf32> to vector<9x128xf32>
    %370 = arith.mulf %329, %369 : vector<9x128xf32>
    %371 = arith.subf %337, %370 : vector<9x128xf32>
    %372 = vector.shape_cast %368 : vector<1x128xf32> to vector<1x128xf32>
    %373 = vector.broadcast %372 : vector<1x128xf32> to vector<9x128xf32>
    %374 = arith.select %366, %373, %371 : vector<9x128xi1>, vector<9x128xf32>
    %375 = vector.extract_strided_slice %345 {offsets = [4, 0], sizes = [1, 128], strides = [1, 1]} : vector<9x128xf32> to vector<1x128xf32>
    %376 = arith.mulf %375, %364 : vector<1x128xf32>
    %377 = vector.broadcast %376 : vector<1x128xf32> to vector<9x128xf32>
    %378 = arith.mulf %329, %377 : vector<9x128xf32>
    %379 = arith.subf %345, %378 : vector<9x128xf32>
    %380 = vector.shape_cast %376 : vector<1x128xf32> to vector<1x128xf32>
    %381 = vector.broadcast %380 : vector<1x128xf32> to vector<9x128xf32>
    %382 = arith.select %366, %381, %379 : vector<9x128xi1>, vector<9x128xf32>
    %383 = vector.extract_strided_slice %353 {offsets = [4, 0], sizes = [1, 128], strides = [1, 1]} : vector<9x128xf32> to vector<1x128xf32>
    %384 = arith.mulf %383, %364 : vector<1x128xf32>
    %385 = vector.broadcast %384 : vector<1x128xf32> to vector<9x128xf32>
    %386 = arith.mulf %329, %385 : vector<9x128xf32>
    %387 = arith.subf %353, %386 : vector<9x128xf32>
    %388 = vector.shape_cast %384 : vector<1x128xf32> to vector<1x128xf32>
    %389 = vector.broadcast %388 : vector<1x128xf32> to vector<9x128xf32>
    %390 = arith.select %366, %389, %387 : vector<9x128xi1>, vector<9x128xf32>
    %391 = vector.extract_strided_slice %361 {offsets = [4, 0], sizes = [1, 128], strides = [1, 1]} : vector<9x128xf32> to vector<1x128xf32>
    %392 = arith.mulf %391, %364 : vector<1x128xf32>
    %393 = vector.broadcast %392 : vector<1x128xf32> to vector<9x128xf32>
    %394 = arith.mulf %329, %393 : vector<9x128xf32>
    %395 = arith.subf %361, %394 : vector<9x128xf32>
    %396 = vector.shape_cast %392 : vector<1x128xf32> to vector<1x128xf32>
    %397 = vector.broadcast %396 : vector<1x128xf32> to vector<9x128xf32>
    %398 = arith.select %366, %397, %395 : vector<9x128xi1>, vector<9x128xf32>
    %399 = vector.extract_strided_slice %374 {offsets = [5, 0], sizes = [1, 128], strides = [1, 1]} : vector<9x128xf32> to vector<1x128xf32>
    %cst_39 = arith.constant 1.000000e+00 : f32
    %400 = vector.broadcast %cst_39 : f32 to vector<1x128xf32>
    %401 = arith.divf %400, %399 : vector<1x128xf32>
    %c5_i32_40 = arith.constant 5 : i32
    %402 = vector.broadcast %c5_i32_40 : i32 to vector<9x128xi32>
    %403 = arith.cmpi eq, %7, %402 : vector<9x128xi32>
    %404 = vector.extract_strided_slice %382 {offsets = [5, 0], sizes = [1, 128], strides = [1, 1]} : vector<9x128xf32> to vector<1x128xf32>
    %405 = arith.mulf %404, %401 : vector<1x128xf32>
    %406 = vector.broadcast %405 : vector<1x128xf32> to vector<9x128xf32>
    %407 = arith.mulf %374, %406 : vector<9x128xf32>
    %408 = arith.subf %382, %407 : vector<9x128xf32>
    %409 = vector.shape_cast %405 : vector<1x128xf32> to vector<1x128xf32>
    %410 = vector.broadcast %409 : vector<1x128xf32> to vector<9x128xf32>
    %411 = arith.select %403, %410, %408 : vector<9x128xi1>, vector<9x128xf32>
    %412 = vector.extract_strided_slice %390 {offsets = [5, 0], sizes = [1, 128], strides = [1, 1]} : vector<9x128xf32> to vector<1x128xf32>
    %413 = arith.mulf %412, %401 : vector<1x128xf32>
    %414 = vector.broadcast %413 : vector<1x128xf32> to vector<9x128xf32>
    %415 = arith.mulf %374, %414 : vector<9x128xf32>
    %416 = arith.subf %390, %415 : vector<9x128xf32>
    %417 = vector.shape_cast %413 : vector<1x128xf32> to vector<1x128xf32>
    %418 = vector.broadcast %417 : vector<1x128xf32> to vector<9x128xf32>
    %419 = arith.select %403, %418, %416 : vector<9x128xi1>, vector<9x128xf32>
    %420 = vector.extract_strided_slice %398 {offsets = [5, 0], sizes = [1, 128], strides = [1, 1]} : vector<9x128xf32> to vector<1x128xf32>
    %421 = arith.mulf %420, %401 : vector<1x128xf32>
    %422 = vector.broadcast %421 : vector<1x128xf32> to vector<9x128xf32>
    %423 = arith.mulf %374, %422 : vector<9x128xf32>
    %424 = arith.subf %398, %423 : vector<9x128xf32>
    %425 = vector.shape_cast %421 : vector<1x128xf32> to vector<1x128xf32>
    %426 = vector.broadcast %425 : vector<1x128xf32> to vector<9x128xf32>
    %427 = arith.select %403, %426, %424 : vector<9x128xi1>, vector<9x128xf32>
    %428 = vector.extract_strided_slice %411 {offsets = [6, 0], sizes = [1, 128], strides = [1, 1]} : vector<9x128xf32> to vector<1x128xf32>
    %cst_41 = arith.constant 1.000000e+00 : f32
    %429 = vector.broadcast %cst_41 : f32 to vector<1x128xf32>
    %430 = arith.divf %429, %428 : vector<1x128xf32>
    %c6_i32_42 = arith.constant 6 : i32
    %431 = vector.broadcast %c6_i32_42 : i32 to vector<9x128xi32>
    %432 = arith.cmpi eq, %7, %431 : vector<9x128xi32>
    %433 = vector.extract_strided_slice %419 {offsets = [6, 0], sizes = [1, 128], strides = [1, 1]} : vector<9x128xf32> to vector<1x128xf32>
    %434 = arith.mulf %433, %430 : vector<1x128xf32>
    %435 = vector.broadcast %434 : vector<1x128xf32> to vector<9x128xf32>
    %436 = arith.mulf %411, %435 : vector<9x128xf32>
    %437 = arith.subf %419, %436 : vector<9x128xf32>
    %438 = vector.shape_cast %434 : vector<1x128xf32> to vector<1x128xf32>
    %439 = vector.broadcast %438 : vector<1x128xf32> to vector<9x128xf32>
    %440 = arith.select %432, %439, %437 : vector<9x128xi1>, vector<9x128xf32>
    %441 = vector.extract_strided_slice %427 {offsets = [6, 0], sizes = [1, 128], strides = [1, 1]} : vector<9x128xf32> to vector<1x128xf32>
    %442 = arith.mulf %441, %430 : vector<1x128xf32>
    %443 = vector.broadcast %442 : vector<1x128xf32> to vector<9x128xf32>
    %444 = arith.mulf %411, %443 : vector<9x128xf32>
    %445 = arith.subf %427, %444 : vector<9x128xf32>
    %446 = vector.shape_cast %442 : vector<1x128xf32> to vector<1x128xf32>
    %447 = vector.broadcast %446 : vector<1x128xf32> to vector<9x128xf32>
    %448 = arith.select %432, %447, %445 : vector<9x128xi1>, vector<9x128xf32>
    %449 = vector.extract_strided_slice %440 {offsets = [7, 0], sizes = [1, 128], strides = [1, 1]} : vector<9x128xf32> to vector<1x128xf32>
    %cst_43 = arith.constant 1.000000e+00 : f32
    %450 = vector.broadcast %cst_43 : f32 to vector<1x128xf32>
    %451 = arith.divf %450, %449 : vector<1x128xf32>
    %c7_i32_44 = arith.constant 7 : i32
    %452 = vector.broadcast %c7_i32_44 : i32 to vector<9x128xi32>
    %453 = arith.cmpi eq, %7, %452 : vector<9x128xi32>
    %454 = vector.extract_strided_slice %448 {offsets = [7, 0], sizes = [1, 128], strides = [1, 1]} : vector<9x128xf32> to vector<1x128xf32>
    %455 = arith.mulf %454, %451 : vector<1x128xf32>
    %456 = vector.broadcast %455 : vector<1x128xf32> to vector<9x128xf32>
    %457 = arith.mulf %440, %456 : vector<9x128xf32>
    %458 = arith.subf %448, %457 : vector<9x128xf32>
    %459 = vector.shape_cast %455 : vector<1x128xf32> to vector<1x128xf32>
    %460 = vector.broadcast %459 : vector<1x128xf32> to vector<9x128xf32>
    %461 = arith.select %453, %460, %458 : vector<9x128xi1>, vector<9x128xf32>
    %c8_i32_45 = arith.constant 8 : i32
    %462 = vector.broadcast %c8_i32_45 : i32 to vector<9x1xi32>
    %463 = arith.cmpi eq, %5, %462 : vector<9x1xi32>
    %cst_46 = arith.constant 5.000000e-01 : f32
    %cst_47 = arith.constant 1.000000e+00 : f32
    %464 = vector.broadcast %cst_46 : f32 to vector<9x1xf32>
    %465 = vector.broadcast %cst_47 : f32 to vector<9x1xf32>
    %466 = arith.select %463, %464, %465 : vector<9x1xi1>, vector<9x1xf32>
    %467 = vector.broadcast %466 : vector<9x1xf32> to vector<9x128xf32>
    %468 = arith.mulf %461, %467 : vector<9x128xf32>
    %c0_48 = arith.constant 0 : index
    %c0_49 = arith.constant 0 : index
    %c0_50 = arith.constant 0 : index
    %469 = vector.load %arg2[%c0_48, %c0_49, %c0_50] : memref<1x9x128xf32, #tpu.memory_space<vmem>>, vector<1x9x128xf32>
    %470 = vector.shape_cast %469 : vector<1x9x128xf32> to vector<9x128xf32>
    %471 = vector.shape_cast %468 : vector<9x128xf32> to vector<1x9x128xf32>
    tpu.vector_store %arg2[%c0_48, %c0_49, %c0_50], %471 {strides = array<i32>} : memref<1x9x128xf32, #tpu.memory_space<vmem>>, vector<1x9x128xf32>,
    return
  }
  func.func @transform_0(%arg0: i32) -> (i32, i32, i32) {
    %c0_i32 = arith.constant 0 : i32
    %c0_i32_0 = arith.constant 0 : i32
    %c0_i32_1 = arith.constant 0 : i32
    return %arg0, %c0_i32, %c0_i32_0 : i32, i32, i32
  }
  func.func @transform_1(%arg0: i32) -> (i32, i32, i32) {
    %c0_i32 = arith.constant 0 : i32
    %c0_i32_0 = arith.constant 0 : i32
    %c0_i32_1 = arith.constant 0 : i32
    return %arg0, %c0_i32, %c0_i32_0 : i32, i32, i32
  }
}

</mosaic_0001>

<llo_original>
// kernel: tpu_custom_call.1
$region0: #{tpu_custom_call.1}
  #allocation0 [shape = 'u32[]', space=smem, size = 0x4, offset = 0x4, fixed_abs, tag = 'smem constant byte address 0x4 - core index']
  #allocation1 [shape = 'u32[72,128]{1,0:T(1,128)}', space=vmem, size = 0x9000, scoped, tag = 'internal scratch']
  %s0 = inlined_call_operand.hbm [shape: f32[2,1,128], index: 0, kind: input, shape index: {}]
  %s1 = inlined_call_operand.vmem [shape: f32[2,9,128], index: 1, kind: output, shape index: {}]
  %s2 = sld [smem:[#allocation0]]
  $region41: #{tpu_custom_call.1} parent=0
    _
  %s4 = ssub.s32 1, %s2
  %s5 = scalar_select 0, %s4, %s2
  $region1: #{tpu_custom_call.1} parent=0
    #allocation2 [shape = 'u8[1024]{0}', space=vmem, size = 0x400, scoped, tag = 'input window, operand 0']
    #allocation3 [shape = 's32[2]{0}', space=sflag, size = 0x8, scoped, tag = 'scoped memory for tpu_custom_call.1']
    %6 = vsyncpa [#allocation3], 0
    %s7 = scalar_lea.sflag [#allocation3], 1
    %8 = vsyncpa %s7, 0
    loop: start=0, step=1, limit=4
    $region2: #{tpu_custom_call.1} parent=1 // loop_pre_header
      _
    $region3: #{tpu_custom_call.1} parent=1 // loop_header
      %s10 = sphi 0, %s14
      %p11 = scmp.ge.s32.totalorder %s10, 4
      %s20 = sphi 0, %s22
      %s23 = sphi 0, %s20
      %s24 = sphi 0, %s23
      %s40 = sphi 0, %s24
      %s46 = sphi 0, %s48
      %s49 = sphi 0, %s46
      %s50 = sphi 0, %s49
      %s66 = sphi 0, %s50
    $region4: #{tpu_custom_call.1} parent=1 // loop_header_branch
      %13 = sbr.rel (%p11) target = $region8
    $region5: #{tpu_custom_call.1} parent=1 // loop_body
      %s15 = ssub.s32 %s10, 1
      %s16 = ssub.s32 %s10, 2
      %s17 = sadd.s32 %s10, 1
      %s18 = ssub.s32 %s10, %s17
      %p19 = scmp.eq.s32.totalorder %s18, 0
      %s21 = sadd.s32 %s20, 1
      %s22 = scalar_select %p19, %s20, %s21
      %p25 = pneg %p19
      %p26 = scmp.eq.s32.totalorder %s10, 1
      %p27 = por %p25, %p26
      %p28 = scmp.ne.s32.totalorder %s20, %s23
      %p29 = scmp.eq.s32.totalorder %s10, 0
      %p30 = por %p28, %p29
      %p31 = scmp.ne.s32.totalorder %s20, %s23
      %p32 = scmp.eq.s32.totalorder %s15, 1
      %p33 = por %p31, %p32
      %p34 = scmp.ne.s32.totalorder %s23, %s24
      %p35 = scmp.eq.s32.totalorder %s15, 0
      %p36 = por %p34, %p35
      %p37 = scmp.ne.s32.totalorder %s23, %s24
      %p38 = scmp.eq.s32.totalorder %s16, 1
      %p39 = por %p37, %p38
      %p41 = scmp.ne.s32.totalorder %s24, %s40
      %p42 = scmp.eq.s32.totalorder %s16, 0
      %p43 = por %p41, %p42
      %s44 = ssub.s32 %s10, %s17
      %p45 = scmp.eq.s32.totalorder %s44, 0
      %s47 = sadd.s32 %s46, 1
      %s48 = scalar_select %p45, %s46, %s47
      %p51 = pneg %p45
      %p52 = scmp.eq.s32.totalorder %s10, 1
      %p53 = por %p51, %p52
      %p54 = scmp.ne.s32.totalorder %s46, %s49
      %p55 = scmp.eq.s32.totalorder %s10, 0
      %p56 = por %p54, %p55
      %p57 = scmp.ne.s32.totalorder %s46, %s49
      %p58 = scmp.eq.s32.totalorder %s15, 1
      %p59 = por %p57, %p58
      %p60 = scmp.ne.s32.totalorder %s49, %s50
      %p61 = scmp.eq.s32.totalorder %s15, 0
      %p62 = por %p60, %p61
      %p63 = scmp.ne.s32.totalorder %s49, %s50
      %p64 = scmp.eq.s32.totalorder %s16, 1
      %p65 = por %p63, %p64
      %p67 = scmp.ne.s32.totalorder %s50, %s66
      %p68 = scmp.eq.s32.totalorder %s16, 0
      %p69 = por %p67, %p68
      %p70 = scmp.le.s32.totalorder 1, %s10
      %p71 = scmp.lt.s32.totalorder %s10, 3
      %p72 = pnand %p70, %p71
      %p73 = pneg %p72
      // Predicated region
      $region9: #{tpu_custom_call.1} parent=5 // pred_check
        _
      $region10: #{tpu_custom_call.1} parent=5 // pred_check_branch
        %75 = sbr.rel (%p72) target = $region12
      $region11: #{tpu_custom_call.1} parent=5 // pred_region
        %s76 = ssub.s32 %s10, 1
      $region12: #{tpu_custom_call.1} parent=5 // pred_fallthru
        _
      %p77 = scmp.lt.s32.totalorder %s10, 2
      // Predicated region
      $region13: #{tpu_custom_call.1} parent=5 // pred_check
        %p78 = pneg %p77
      $region14: #{tpu_custom_call.1} parent=5 // pred_check_branch
        %80 = sbr.rel (%p78) target = $region16
      $region15: #{tpu_custom_call.1} parent=5 // pred_region
        // Predicated region
        $region17: #{tpu_custom_call.1} parent=15 // pred_check
          %p81 = pneg %p30
        $region18: #{tpu_custom_call.1} parent=15 // pred_check_branch
          %83 = sbr.rel (%p81) target = $region20
        $region19: #{tpu_custom_call.1} parent=15 // pred_region
          %s84 = sand.u32 %s20, 1
          %s85 = scalar_lea.sflag [#allocation3], %s84
          %s86 = sand.u32 %s20, 1
          %s87 = scalar_lea.vmem [#allocation2], %s86
          %89 = vsyncadd %s85, 0
          %s90 = scalar_lea.hbm %s0, %s10
          %s92 = sshll.u32 %s90, 4
          %s93 = int_to_ptr.hbm [resolvable:$true] %s92
          %s94 = sshll.u32 %s87, 4
          %s95 = int_to_ptr.vmem [resolvable:$true] %s94
          %97 = dma.hbm_to_vmem [thread:$0]  %s93, 16, %s95, %s85
        $region20: #{tpu_custom_call.1} parent=15 // pred_fallthru
          _
      $region16: #{tpu_custom_call.1} parent=5 // pred_fallthru
        _
      %p98 = scmp.le.s32.totalorder 1, %s10
      %p99 = scmp.lt.s32.totalorder %s10, 3
      %p100 = pnand %p98, %p99
      %p101 = pneg %p100
      // Predicated region
      $region21: #{tpu_custom_call.1} parent=5 // pred_check
        _
      $region22: #{tpu_custom_call.1} parent=5 // pred_check_branch
        %103 = sbr.rel (%p100) target = $region24
      $region23: #{tpu_custom_call.1} parent=5 // pred_region
        %s104 = ssub.s32 %s10, 1
        %s105 = sand.u32 %s23, 1
        %s106 = scalar_lea.sflag [#allocation3], %s105
        %s107 = sand.u32 %s23, 1
        %s108 = scalar_lea.vmem [#allocation2], %s107
        // Predicated region
        $region25: #{tpu_custom_call.1} parent=23 // pred_check
          %p109 = pneg %p36
        $region26: #{tpu_custom_call.1} parent=23 // pred_check_branch
          %111 = sbr.rel (%p109) target = $region28
        $region27: #{tpu_custom_call.1} parent=23 // pred_region
          %113 = dma.done %s106, 16
        $region28: #{tpu_custom_call.1} parent=23 // pred_fallthru
          _
        %s114 = sand.u32 %s23, 1
        %s115 = scalar_lea.sflag [#allocation3], %s114
        %s116 = sand.u32 %s23, 1
        %s117 = scalar_lea.vmem [#allocation2], %s116
        %p118 = pneg %p36
        %p119 = pneg %p33
        %p120 = pneg %p62
        %p121 = pneg %p59
        %p122 = scmp.lt.s32.totalorder %s15, 1
        %s123 = scalar_select %p122, %s15, 1
        %s124 = smul.addr %s123, 2
        %s125 = smul.addr %s124, 8
        %s126 = scalar_lea.vmem %s1, %s125
        %p127 = scmp.lt.s32.totalorder %s15, 1
        %s128 = scalar_select %p127, %s15, 1
        %s129 = smul.addr %s128, 2
        %s130 = smul.addr %s129, 8
        %s131 = scalar_lea.vmem %s1, %s130
        %v132 = vld [vmem:[%s108] sm:$0x1]
        %v133 = vmul.f32 %v132, 1.442695
        %v134 = vpow.pop %v133
        %v135 = vmul.f32 %v134, -0.5
        %v136 = vlaneseq
        %v137 = vshrl.u32 %v136, 7
        %v138 = vadd.s32 %v137, 8
        %v139 = vcvt.s32.f32 %v137
        %v140 = vcvt.s32.f32 %v138
        %v141 = vmul.f32 %v139, %v139
        %v142 = vmul.f32 %v140, %v140
        %v144 = vperm.slane %v135, 0
        %v146 = vmul.f32 %v144, %v141
        %v147 = vmul.f32 %v144, %v142
        %v148 = vmul.f32 %v146, 1.442695
        %v149 = vpow.pop %v148
        %v150 = vmul.f32 %v147, 1.442695
        %v151 = vpow.pop %v150
        %vm152 = vcmp.eq.s32.totalorder %v137, 0
        %vm153 = vcmp.eq.s32.totalorder %v138, 0
        %v154 = vsel %vm152, 0.0001, 0.0
        %v155 = vsel %vm153, 0.0001, 0.0
        %v156 = vadd.f32 %v149, %v154
        %v157 = vadd.f32 %v151, %v155
        %v158 = vsub.f32 %v139, 1.0
        %v159 = vsub.f32 %v140, 1.0
        %v160 = vmul.f32 %v158, %v158
        %v161 = vmul.f32 %v159, %v159
        %v162 = vmul.f32 %v144, %v160
        %v163 = vmul.f32 %v144, %v161
        %v164 = vmul.f32 %v162, 1.442695
        %v165 = vpow.pop %v164
        %v166 = vmul.f32 %v163, 1.442695
        %v167 = vpow.pop %v166
        %vm168 = vcmp.eq.s32.totalorder %v137, 1
        %vm169 = vcmp.eq.s32.totalorder %v138, 1
        %v170 = vsel %vm168, 0.0001, 0.0
        %v171 = vsel %vm169, 0.0001, 0.0
        %v172 = vadd.f32 %v165, %v170
        %v173 = vadd.f32 %v167, %v171
        %v174 = vsub.f32 %v139, 2.0
        %v175 = vsub.f32 %v140, 2.0
        %v176 = vmul.f32 %v174, %v174
        %v177 = vmul.f32 %v175, %v175
        %v178 = vmul.f32 %v144, %v176
        %v179 = vmul.f32 %v144, %v177
        %v180 = vmul.f32 %v178, 1.442695
        %v181 = vpow.pop %v180
        %v182 = vmul.f32 %v179, 1.442695
        %v183 = vpow.pop %v182
        %vm184 = vcmp.eq.s32.totalorder %v137, 2
        %vm185 = vcmp.eq.s32.totalorder %v138, 2
        %v186 = vsel %vm184, 0.0001, 0.0
        %v187 = vsel %vm185, 0.0001, 0.0
        %v188 = vadd.f32 %v181, %v186
        %v189 = vadd.f32 %v183, %v187
        %v190 = vsub.f32 %v139, 3.0
        %v191 = vsub.f32 %v140, 3.0
        %v192 = vmul.f32 %v190, %v190
        %v193 = vmul.f32 %v191, %v191
        %v194 = vmul.f32 %v144, %v192
        %v195 = vmul.f32 %v144, %v193
        %v196 = vmul.f32 %v194, 1.442695
        %v197 = vpow.pop %v196
        %v198 = vmul.f32 %v195, 1.442695
        %v199 = vpow.pop %v198
        %vm200 = vcmp.eq.s32.totalorder %v137, 3
        %vm201 = vcmp.eq.s32.totalorder %v138, 3
        %v202 = vsel %vm200, 0.0001, 0.0
        %v203 = vsel %vm201, 0.0001, 0.0
        %v204 = vadd.f32 %v197, %v202
        %v205 = vadd.f32 %v199, %v203
        %v206 = vsub.f32 %v139, 4.0
        %v207 = vsub.f32 %v140, 4.0
        %v208 = vmul.f32 %v206, %v206
        %v209 = vmul.f32 %v207, %v207
        %v210 = vmul.f32 %v144, %v208
        %v211 = vmul.f32 %v144, %v209
        %v212 = vmul.f32 %v210, 1.442695
        %v213 = vpow.pop %v212
        %v214 = vmul.f32 %v211, 1.442695
        %v215 = vpow.pop %v214
        %vm216 = vcmp.eq.s32.totalorder %v137, 4
        %vm217 = vcmp.eq.s32.totalorder %v138, 4
        %v218 = vsel %vm216, 0.0001, 0.0
        %v219 = vsel %vm217, 0.0001, 0.0
        %v220 = vadd.f32 %v213, %v218
        %v221 = vadd.f32 %v215, %v219
        %v222 = vsub.f32 %v139, 5.0
        %v223 = vsub.f32 %v140, 5.0
        %v224 = vmul.f32 %v222, %v222
        %v225 = vmul.f32 %v223, %v223
        %v226 = vmul.f32 %v144, %v224
        %v227 = vmul.f32 %v144, %v225
        %v228 = vmul.f32 %v226, 1.442695
        %v229 = vpow.pop %v228
        %v230 = vmul.f32 %v227, 1.442695
        %v231 = vpow.pop %v230
        %vm232 = vcmp.eq.s32.totalorder %v137, 5
        %vm233 = vcmp.eq.s32.totalorder %v138, 5
        %v234 = vsel %vm232, 0.0001, 0.0
        %v235 = vsel %vm233, 0.0001, 0.0
        %v236 = vadd.f32 %v229, %v234
        %v237 = vadd.f32 %v231, %v235
        %v238 = vsub.f32 %v139, 6.0
        %v239 = vsub.f32 %v140, 6.0
        %v240 = vmul.f32 %v238, %v238
        %v241 = vmul.f32 %v239, %v239
        %v242 = vmul.f32 %v144, %v240
        %v243 = vmul.f32 %v144, %v241
        %v244 = vmul.f32 %v242, 1.442695
        %v245 = vpow.pop %v244
        %v246 = vmul.f32 %v243, 1.442695
        %v247 = vpow.pop %v246
        %vm248 = vcmp.eq.s32.totalorder %v137, 6
        %vm249 = vcmp.eq.s32.totalorder %v138, 6
        %v250 = vsel %vm248, 0.0001, 0.0
        %v251 = vsel %vm249, 0.0001, 0.0
        %v252 = vadd.f32 %v245, %v250
        %v253 = vadd.f32 %v247, %v251
        %v254 = vsub.f32 %v139, 7.0
        %v255 = vsub.f32 %v140, 7.0
        %v256 = vmul.f32 %v254, %v254
        %v257 = vmul.f32 %v255, %v255
        %v258 = vmul.f32 %v144, %v256
        %v259 = vmul.f32 %v144, %v257
        %v260 = vmul.f32 %v258, 1.442695
        %v261 = vpow.pop %v260
        %v262 = vmul.f32 %v259, 1.442695
        %v263 = vpow.pop %v262
        %vm264 = vcmp.eq.s32.totalorder %v137, 7
        %vm265 = vcmp.eq.s32.totalorder %v138, 7
        %v266 = vsel %vm264, 0.0001, 0.0
        %v267 = vsel %vm265, 0.0001, 0.0
        %v268 = vadd.f32 %v261, %v266
        %v269 = vadd.f32 %v263, %v267
        %v270 = vsub.f32 %v139, 8.0
        %v271 = vsub.f32 %v140, 8.0
        %v272 = vmul.f32 %v270, %v270
        %v273 = vmul.f32 %v271, %v271
        %v274 = vmul.f32 %v144, %v272
        %v275 = vmul.f32 %v144, %v273
        %v276 = vmul.f32 %v274, 1.442695
        %v277 = vpow.pop %v276
        %v278 = vmul.f32 %v275, 1.442695
        %v279 = vpow.pop %v278
        %vm280 = vcmp.eq.s32.totalorder %v137, 8
        %vm281 = vcmp.eq.s32.totalorder %v138, 8
        %v282 = vsel %vm280, 0.0001, 0.0
        %v283 = vsel %vm281, 0.0001, 0.0
        %v284 = vadd.f32 %v277, %v282
        %v285 = vadd.f32 %v279, %v283
        %v286 = vrcp.pop %v156
        %v287 = vmul.f32 %v156, %v286
        %v288 = vsub.f32 1.0, %v287
        %v289 = vmul.f32 %v286, %v288
        %v290 = vadd.f32 %v286, %v289
        %vm291 = vweird.f32 %v156
        %vm292 = vweird.f32 %v286
        %vm293 = vmor %vm291, %vm292
        %v294 = vsel %vm293, %v286, %v290
        %v295 = vand.u32 2147483647, %v156
        %vm296 = vcmp.eq.f32.partialorder %v295, 8.507059e+37
        %v297 = vand.u32 %v156, 2147483648
        %v298 = vor.u32 1.1754944e-38, %v297
        %v299 = vsel %vm296, %v298, %v294
        %v300 = vmul.f32 1.0, %v299
        %v301 = vmul.f32 %v172, %v300
        %v302 = vperm.slane %v301, 0
        %v303 = vmul.f32 %v156, %v302
        %v304 = vmul.f32 %v157, %v302
        %v305 = vsub.f32 %v172, %v303
        %v306 = vsub.f32 %v173, %v304
        %v307 = vsel %vm152, %v302, %v305
        %v308 = vsel %vm153, %v302, %v306
        %v309 = vmul.f32 %v188, %v300
        %v310 = vperm.slane %v309, 0
        %v311 = vmul.f32 %v156, %v310
        %v312 = vmul.f32 %v157, %v310
        %v313 = vsub.f32 %v188, %v311
        %v314 = vsub.f32 %v189, %v312
        %v315 = vsel %vm152, %v310, %v313
        %v316 = vsel %vm153, %v310, %v314
        %v317 = vmul.f32 %v204, %v300
        %v318 = vperm.slane %v317, 0
        %v319 = vmul.f32 %v156, %v318
        %v320 = vmul.f32 %v157, %v318
        %v321 = vsub.f32 %v204, %v319
        %v322 = vsub.f32 %v205, %v320
        %v323 = vsel %vm152, %v318, %v321
        %v324 = vsel %vm153, %v318, %v322
        %v325 = vmul.f32 %v220, %v300
        %v326 = vperm.slane %v325, 0
        %v327 = vmul.f32 %v156, %v326
        %v328 = vmul.f32 %v157, %v326
        %v329 = vsub.f32 %v220, %v327
        %v330 = vsub.f32 %v221, %v328
        %v331 = vsel %vm152, %v326, %v329
        %v332 = vsel %vm153, %v326, %v330
        %v333 = vmul.f32 %v236, %v300
        %v334 = vperm.slane %v333, 0
        %v335 = vmul.f32 %v156, %v334
        %v336 = vmul.f32 %v157, %v334
        %v337 = vsub.f32 %v236, %v335
        %v338 = vsub.f32 %v237, %v336
        %v339 = vsel %vm152, %v334, %v337
        %v340 = vsel %vm153, %v334, %v338
        %v341 = vmul.f32 %v252, %v300
        %v342 = vperm.slane %v341, 0
        %v343 = vmul.f32 %v156, %v342
        %v344 = vmul.f32 %v157, %v342
        %v345 = vsub.f32 %v252, %v343
        %v346 = vsub.f32 %v253, %v344
        %v347 = vsel %vm152, %v342, %v345
        %v348 = vsel %vm153, %v342, %v346
        %v349 = vmul.f32 %v268, %v300
        %v350 = vperm.slane %v349, 0
        %v351 = vmul.f32 %v156, %v350
        %v352 = vmul.f32 %v157, %v350
        %v353 = vsub.f32 %v268, %v351
        %v354 = vsub.f32 %v269, %v352
        %v355 = vsel %vm152, %v350, %v353
        %v356 = vsel %vm153, %v350, %v354
        %v357 = vmul.f32 %v284, %v300
        %v358 = vperm.slane %v357, 0
        %v359 = vmul.f32 %v156, %v358
        %v360 = vmul.f32 %v157, %v358
        %v361 = vsub.f32 %v284, %v359
        %v362 = vsub.f32 %v285, %v360
        %v363 = vsel %vm152, %v358, %v361
        %v364 = vsel %vm153, %v358, %v362
        %v365 = vrcp.pop %v307
        %v366 = vmul.f32 %v307, %v365
        %v367 = vsub.f32 1.0, %v366
        %v368 = vmul.f32 %v365, %v367
        %v369 = vadd.f32 %v365, %v368
        %vm370 = vweird.f32 %v307
        %vm371 = vweird.f32 %v365
        %vm372 = vmor %vm370, %vm371
        %v373 = vsel %vm372, %v365, %v369
        %v374 = vand.u32 2147483647, %v307
        %vm375 = vcmp.eq.f32.partialorder %v374, 8.507059e+37
        %v376 = vand.u32 %v307, 2147483648
        %v377 = vor.u32 1.1754944e-38, %v376
        %v378 = vsel %vm375, %v377, %v373
        %v379 = vmul.f32 1.0, %v378
        %v380 = vmul.f32 %v315, %v379
        %v381 = vperm.slane %v380, 1
        %v382 = vmul.f32 %v307, %v381
        %v383 = vmul.f32 %v308, %v381
        %v384 = vsub.f32 %v315, %v382
        %v385 = vsub.f32 %v316, %v383
        %v386 = vsel %vm168, %v381, %v384
        %v387 = vsel %vm169, %v381, %v385
        %v388 = vmul.f32 %v323, %v379
        %v389 = vperm.slane %v388, 1
        %v390 = vmul.f32 %v307, %v389
        %v391 = vmul.f32 %v308, %v389
        %v392 = vsub.f32 %v323, %v390
        %v393 = vsub.f32 %v324, %v391
        %v394 = vsel %vm168, %v389, %v392
        %v395 = vsel %vm169, %v389, %v393
        %v396 = vmul.f32 %v331, %v379
        %v397 = vperm.slane %v396, 1
        %v398 = vmul.f32 %v307, %v397
        %v399 = vmul.f32 %v308, %v397
        %v400 = vsub.f32 %v331, %v398
        %v401 = vsub.f32 %v332, %v399
        %v402 = vsel %vm168, %v397, %v400
        %v403 = vsel %vm169, %v397, %v401
        %v404 = vmul.f32 %v339, %v379
        %v405 = vperm.slane %v404, 1
        %v406 = vmul.f32 %v307, %v405
        %v407 = vmul.f32 %v308, %v405
        %v408 = vsub.f32 %v339, %v406
        %v409 = vsub.f32 %v340, %v407
        %v410 = vsel %vm168, %v405, %v408
        %v411 = vsel %vm169, %v405, %v409
        %v412 = vmul.f32 %v347, %v379
        %v413 = vperm.slane %v412, 1
        %v414 = vmul.f32 %v307, %v413
        %v415 = vmul.f32 %v308, %v413
        %v416 = vsub.f32 %v347, %v414
        %v417 = vsub.f32 %v348, %v415
        %v418 = vsel %vm168, %v413, %v416
        %v419 = vsel %vm169, %v413, %v417
        %v420 = vmul.f32 %v355, %v379
        %v421 = vperm.slane %v420, 1
        %v422 = vmul.f32 %v307, %v421
        %v423 = vmul.f32 %v308, %v421
        %v424 = vsub.f32 %v355, %v422
        %v425 = vsub.f32 %v356, %v423
        %v426 = vsel %vm168, %v421, %v424
        %v427 = vsel %vm169, %v421, %v425
        %v428 = vmul.f32 %v363, %v379
        %v429 = vperm.slane %v428, 1
        %v430 = vmul.f32 %v307, %v429
        %v431 = vmul.f32 %v308, %v429
        %v432 = vsub.f32 %v363, %v430
        %v433 = vsub.f32 %v364, %v431
        %v434 = vsel %vm168, %v429, %v432
        %v435 = vsel %vm169, %v429, %v433
        %v436 = vrcp.pop %v386
        %v437 = vmul.f32 %v386, %v436
        %v438 = vsub.f32 1.0, %v437
        %v439 = vmul.f32 %v436, %v438
        %v440 = vadd.f32 %v436, %v439
        %vm441 = vweird.f32 %v386
        %vm442 = vweird.f32 %v436
        %vm443 = vmor %vm441, %vm442
        %v444 = vsel %vm443, %v436, %v440
        %v445 = vand.u32 2147483647, %v386
        %vm446 = vcmp.eq.f32.partialorder %v445, 8.507059e+37
        %v447 = vand.u32 %v386, 2147483648
        %v448 = vor.u32 1.1754944e-38, %v447
        %v449 = vsel %vm446, %v448, %v444
        %v450 = vmul.f32 1.0, %v449
        %v451 = vmul.f32 %v394, %v450
        %v452 = vperm.slane %v451, 2
        %v453 = vmul.f32 %v386, %v452
        %v454 = vmul.f32 %v387, %v452
        %v455 = vsub.f32 %v394, %v453
        %v456 = vsub.f32 %v395, %v454
        %v457 = vsel %vm184, %v452, %v455
        %v458 = vsel %vm185, %v452, %v456
        %v459 = vmul.f32 %v402, %v450
        %v460 = vperm.slane %v459, 2
        %v461 = vmul.f32 %v386, %v460
        %v462 = vmul.f32 %v387, %v460
        %v463 = vsub.f32 %v402, %v461
        %v464 = vsub.f32 %v403, %v462
        %v465 = vsel %vm184, %v460, %v463
        %v466 = vsel %vm185, %v460, %v464
        %v467 = vmul.f32 %v410, %v450
        %v468 = vperm.slane %v467, 2
        %v469 = vmul.f32 %v386, %v468
        %v470 = vmul.f32 %v387, %v468
        %v471 = vsub.f32 %v410, %v469
        %v472 = vsub.f32 %v411, %v470
        %v473 = vsel %vm184, %v468, %v471
        %v474 = vsel %vm185, %v468, %v472
        %v475 = vmul.f32 %v418, %v450
        %v476 = vperm.slane %v475, 2
        %v477 = vmul.f32 %v386, %v476
        %v478 = vmul.f32 %v387, %v476
        %v479 = vsub.f32 %v418, %v477
        %v480 = vsub.f32 %v419, %v478
        %v481 = vsel %vm184, %v476, %v479
        %v482 = vsel %vm185, %v476, %v480
        %v483 = vmul.f32 %v426, %v450
        %v484 = vperm.slane %v483, 2
        %v485 = vmul.f32 %v386, %v484
        %v486 = vmul.f32 %v387, %v484
        %v487 = vsub.f32 %v426, %v485
        %v488 = vsub.f32 %v427, %v486
        %v489 = vsel %vm184, %v484, %v487
        %v490 = vsel %vm185, %v484, %v488
        %v491 = vmul.f32 %v434, %v450
        %v492 = vperm.slane %v491, 2
        %v493 = vmul.f32 %v386, %v492
        %v494 = vmul.f32 %v387, %v492
        %v495 = vsub.f32 %v434, %v493
        %v496 = vsub.f32 %v435, %v494
        %v497 = vsel %vm184, %v492, %v495
        %v498 = vsel %vm185, %v492, %v496
        %v499 = vrcp.pop %v457
        %v500 = vmul.f32 %v457, %v499
        %v501 = vsub.f32 1.0, %v500
        %v502 = vmul.f32 %v499, %v501
        %v503 = vadd.f32 %v499, %v502
        %vm504 = vweird.f32 %v457
        %vm505 = vweird.f32 %v499
        %vm506 = vmor %vm504, %vm505
        %v507 = vsel %vm506, %v499, %v503
        %v508 = vand.u32 2147483647, %v457
        %vm509 = vcmp.eq.f32.partialorder %v508, 8.507059e+37
        %v510 = vand.u32 %v457, 2147483648
        %v511 = vor.u32 1.1754944e-38, %v510
        %v512 = vsel %vm509, %v511, %v507
        %v513 = vmul.f32 1.0, %v512
        %v514 = vmul.f32 %v465, %v513
        %v515 = vperm.slane %v514, 3
        %v516 = vmul.f32 %v457, %v515
        %v517 = vmul.f32 %v458, %v515
        %v518 = vsub.f32 %v465, %v516
        %v519 = vsub.f32 %v466, %v517
        %v520 = vsel %vm200, %v515, %v518
        %v521 = vsel %vm201, %v515, %v519
        %v522 = vmul.f32 %v473, %v513
        %v523 = vperm.slane %v522, 3
        %v524 = vmul.f32 %v457, %v523
        %v525 = vmul.f32 %v458, %v523
        %v526 = vsub.f32 %v473, %v524
        %v527 = vsub.f32 %v474, %v525
        %v528 = vsel %vm200, %v523, %v526
        %v529 = vsel %vm201, %v523, %v527
        %v530 = vmul.f32 %v481, %v513
        %v531 = vperm.slane %v530, 3
        %v532 = vmul.f32 %v457, %v531
        %v533 = vmul.f32 %v458, %v531
        %v534 = vsub.f32 %v481, %v532
        %v535 = vsub.f32 %v482, %v533
        %v536 = vsel %vm200, %v531, %v534
        %v537 = vsel %vm201, %v531, %v535
        %v538 = vmul.f32 %v489, %v513
        %v539 = vperm.slane %v538, 3
        %v540 = vmul.f32 %v457, %v539
        %v541 = vmul.f32 %v458, %v539
        %v542 = vsub.f32 %v489, %v540
        %v543 = vsub.f32 %v490, %v541
        %v544 = vsel %vm200, %v539, %v542
        %v545 = vsel %vm201, %v539, %v543
        %v546 = vmul.f32 %v497, %v513
        %v547 = vperm.slane %v546, 3
        %v548 = vmul.f32 %v457, %v547
        %v549 = vmul.f32 %v458, %v547
        %v550 = vsub.f32 %v497, %v548
        %v551 = vsub.f32 %v498, %v549
        %v552 = vsel %vm200, %v547, %v550
        %v553 = vsel %vm201, %v547, %v551
        %v554 = vrcp.pop %v520
        %v555 = vmul.f32 %v520, %v554
        %v556 = vsub.f32 1.0, %v555
        %v557 = vmul.f32 %v554, %v556
        %v558 = vadd.f32 %v554, %v557
        %vm559 = vweird.f32 %v520
        %vm560 = vweird.f32 %v554
        %vm561 = vmor %vm559, %vm560
        %v562 = vsel %vm561, %v554, %v558
        %v563 = vand.u32 2147483647, %v520
        %vm564 = vcmp.eq.f32.partialorder %v563, 8.507059e+37
        %v565 = vand.u32 %v520, 2147483648
        %v566 = vor.u32 1.1754944e-38, %v565
        %v567 = vsel %vm564, %v566, %v562
        %v568 = vmul.f32 1.0, %v567
        %v569 = vmul.f32 %v528, %v568
        %v570 = vperm.slane %v569, 4
        %v571 = vmul.f32 %v520, %v570
        %v572 = vmul.f32 %v521, %v570
        %v573 = vsub.f32 %v528, %v571
        %v574 = vsub.f32 %v529, %v572
        %v575 = vsel %vm216, %v570, %v573
        %v576 = vsel %vm217, %v570, %v574
        %v577 = vmul.f32 %v536, %v568
        %v578 = vperm.slane %v577, 4
        %v579 = vmul.f32 %v520, %v578
        %v580 = vmul.f32 %v521, %v578
        %v581 = vsub.f32 %v536, %v579
        %v582 = vsub.f32 %v537, %v580
        %v583 = vsel %vm216, %v578, %v581
        %v584 = vsel %vm217, %v578, %v582
        %v585 = vmul.f32 %v544, %v568
        %v586 = vperm.slane %v585, 4
        %v587 = vmul.f32 %v520, %v586
        %v588 = vmul.f32 %v521, %v586
        %v589 = vsub.f32 %v544, %v587
        %v590 = vsub.f32 %v545, %v588
        %v591 = vsel %vm216, %v586, %v589
        %v592 = vsel %vm217, %v586, %v590
        %v593 = vmul.f32 %v552, %v568
        %v594 = vperm.slane %v593, 4
        %v595 = vmul.f32 %v520, %v594
        %v596 = vmul.f32 %v521, %v594
        %v597 = vsub.f32 %v552, %v595
        %v598 = vsub.f32 %v553, %v596
        %v599 = vsel %vm216, %v594, %v597
        %v600 = vsel %vm217, %v594, %v598
        %v601 = vrcp.pop %v575
        %v602 = vmul.f32 %v575, %v601
        %v603 = vsub.f32 1.0, %v602
        %v604 = vmul.f32 %v601, %v603
        %v605 = vadd.f32 %v601, %v604
        %vm606 = vweird.f32 %v575
        %vm607 = vweird.f32 %v601
        %vm608 = vmor %vm606, %vm607
        %v609 = vsel %vm608, %v601, %v605
        %v610 = vand.u32 2147483647, %v575
        %vm611 = vcmp.eq.f32.partialorder %v610, 8.507059e+37
        %v612 = vand.u32 %v575, 2147483648
        %v613 = vor.u32 1.1754944e-38, %v612
        %v614 = vsel %vm611, %v613, %v609
        %v615 = vmul.f32 1.0, %v614
        %v616 = vmul.f32 %v583, %v615
        %v617 = vperm.slane %v616, 5
        %v618 = vmul.f32 %v575, %v617
        %v619 = vmul.f32 %v576, %v617
        %v620 = vsub.f32 %v583, %v618
        %v621 = vsub.f32 %v584, %v619
        %v622 = vsel %vm232, %v617, %v620
        %v623 = vsel %vm233, %v617, %v621
        %v624 = vmul.f32 %v591, %v615
        %v625 = vperm.slane %v624, 5
        %v626 = vmul.f32 %v575, %v625
        %v627 = vmul.f32 %v576, %v625
        %v628 = vsub.f32 %v591, %v626
        %v629 = vsub.f32 %v592, %v627
        %v630 = vsel %vm232, %v625, %v628
        %v631 = vsel %vm233, %v625, %v629
        %v632 = vmul.f32 %v599, %v615
        %v633 = vperm.slane %v632, 5
        %v634 = vmul.f32 %v575, %v633
        %v635 = vmul.f32 %v576, %v633
        %v636 = vsub.f32 %v599, %v634
        %v637 = vsub.f32 %v600, %v635
        %v638 = vsel %vm232, %v633, %v636
        %v639 = vsel %vm233, %v633, %v637
        %v640 = vrcp.pop %v622
        %v641 = vmul.f32 %v622, %v640
        %v642 = vsub.f32 1.0, %v641
        %v643 = vmul.f32 %v640, %v642
        %v644 = vadd.f32 %v640, %v643
        %vm645 = vweird.f32 %v622
        %vm646 = vweird.f32 %v640
        %vm647 = vmor %vm645, %vm646
        %v648 = vsel %vm647, %v640, %v644
        %v649 = vand.u32 2147483647, %v622
        %vm650 = vcmp.eq.f32.partialorder %v649, 8.507059e+37
        %v651 = vand.u32 %v622, 2147483648
        %v652 = vor.u32 1.1754944e-38, %v651
        %v653 = vsel %vm650, %v652, %v648
        %v654 = vmul.f32 1.0, %v653
        %v655 = vmul.f32 %v630, %v654
        %v656 = vperm.slane %v655, 6
        %v657 = vmul.f32 %v622, %v656
        %v658 = vmul.f32 %v623, %v656
        %v659 = vsub.f32 %v630, %v657
        %v660 = vsub.f32 %v631, %v658
        %v661 = vsel %vm248, %v656, %v659
        %v662 = vsel %vm249, %v656, %v660
        %v663 = vmul.f32 %v638, %v654
        %v664 = vperm.slane %v663, 6
        %v665 = vmul.f32 %v622, %v664
        %v666 = vmul.f32 %v623, %v664
        %v667 = vsub.f32 %v638, %v665
        %v668 = vsub.f32 %v639, %v666
        %v669 = vsel %vm248, %v664, %v667
        %v670 = vsel %vm249, %v664, %v668
        %v671 = vrcp.pop %v661
        %v672 = vmul.f32 %v661, %v671
        %v673 = vsub.f32 1.0, %v672
        %v674 = vmul.f32 %v671, %v673
        %v675 = vadd.f32 %v671, %v674
        %vm676 = vweird.f32 %v661
        %vm677 = vweird.f32 %v671
        %vm678 = vmor %vm676, %vm677
        %v679 = vsel %vm678, %v671, %v675
        %v680 = vand.u32 2147483647, %v661
        %vm681 = vcmp.eq.f32.partialorder %v680, 8.507059e+37
        %v682 = vand.u32 %v661, 2147483648
        %v683 = vor.u32 1.1754944e-38, %v682
        %v684 = vsel %vm681, %v683, %v679
        %v685 = vmul.f32 1.0, %v684
        %v686 = vmul.f32 %v669, %v685
        %v687 = vperm.slane %v686, 7
        %v688 = vmul.f32 %v661, %v687
        %v689 = vmul.f32 %v662, %v687
        %v690 = vsub.f32 %v669, %v688
        %v691 = vsub.f32 %v670, %v689
        %v692 = vsel %vm264, %v687, %v690
        %v693 = vsel %vm265, %v687, %v691
        %v694 = vsel %vm280, 0.5, 1.0
        %v695 = vsel %vm281, 0.5, 1.0
        %v696 = vmul.f32 %v692, %v694
        %v697 = vmul.f32 %v693, %v695
        %698 = vst [vmem:[%s131] sm:$0xff] %v696
        %699 = vst [vmem:[%s131 + $0x8] sm:$0x1] %v697
        %p700 = scmp.lt.s32.totalorder %s15, 1
        %s701 = scalar_select %p700, %s15, 1
        %s702 = smul.addr %s701, 2
        %s703 = smul.addr %s702, 8
        %s704 = scalar_lea.vmem %s1, %s703
        // Predicated region
        $region29: #{tpu_custom_call.1} parent=23 // pred_check
          %p705 = pneg %p59
        $region30: #{tpu_custom_call.1} parent=23 // pred_check_branch
          %707 = sbr.rel (%p705) target = $region32
        $region31: #{tpu_custom_call.1} parent=23 // pred_region
          _
        $region32: #{tpu_custom_call.1} parent=23 // pred_fallthru
          _
      $region24: #{tpu_custom_call.1} parent=5 // pred_fallthru
        _
      %p708 = scmp.le.s32.totalorder 2, %s10
      // Predicated region
      $region33: #{tpu_custom_call.1} parent=5 // pred_check
        %p709 = pneg %p708
      $region34: #{tpu_custom_call.1} parent=5 // pred_check_branch
        %711 = sbr.rel (%p709) target = $region36
      $region35: #{tpu_custom_call.1} parent=5 // pred_region
        %s712 = ssub.s32 %s10, 2
        // Predicated region
        $region37: #{tpu_custom_call.1} parent=35 // pred_check
          %p713 = pneg %p65
        $region38: #{tpu_custom_call.1} parent=35 // pred_check_branch
          %715 = sbr.rel (%p713) target = $region40
        $region39: #{tpu_custom_call.1} parent=35 // pred_region
          %p716 = scmp.lt.s32.totalorder %s16, 1
          %s717 = scalar_select %p716, %s16, 1
          %s718 = smul.addr %s717, 2
          %s719 = smul.addr %s718, 8
          %s720 = scalar_lea.vmem %s1, %s719
        $region40: #{tpu_custom_call.1} parent=35 // pred_fallthru
          _
      $region36: #{tpu_custom_call.1} parent=5 // pred_fallthru
        _
    $region6: #{tpu_custom_call.1} parent=1 // loop_footer
      %s14 = sadd.s32 1, %s10
    $region7: #{tpu_custom_call.1} parent=1 // loop_footer_branch
      %9 = sbr.rel target = $region3
    $region8: #{tpu_custom_call.1} parent=1 // loop_exit
      _
    %721 = vsyncpa [#allocation3], 1
    %s722 = scalar_lea.sflag [#allocation3], 1
    %723 = vsyncpa %s722, 1

</llo_original>
